<compile_context>
chip_gen: v6e
topology: v6e:2x2x1
jax: 0.10.0
libtpu: 0.0.40
codegen_flags: <defaults>
</compile_context>

<pallas_src>
import functools

import jax
import jax.numpy as jnp
from jax.experimental import pallas as pl
from jax.experimental.pallas import tpu as pltpu


def _crps_loss_kernel(yp_ref, yt_ref, out_ref, tri_ref, acc_ref,
                      *, batch, n_class, tile_b):
    # yp_ref, yt_ref : (TB, C) input tiles in VMEM
    # out_ref        : (1, 1) scalar loss in SMEM
    # tri_ref        : (C, C) f32 VMEM scratch, upper-triangular ones (cumsum op)
    # acc_ref        : (1,)   f32 SMEM scratch, running sum of squared errors
    i = pl.program_id(0)
    n_steps = pl.num_programs(0)

    @pl.when(i == 0)
    def _init():
        acc_ref[0] = jnp.float32(0.0)
        # tri[k, j] = 1.0 for k <= j  =>  (x @ tri)[b, j] = cumsum(x, axis=-1)[b, j]
        row = jax.lax.broadcasted_iota(jnp.int32, (n_class, n_class), 0)
        col = jax.lax.broadcasted_iota(jnp.int32, (n_class, n_class), 1)
        tri_ref[...] = jnp.where(row <= col, jnp.float32(1.0), jnp.float32(0.0))

    x = yp_ref[...].astype(jnp.float32)

    # softmax over the class axis (last axis == torch dim 1), kept in f32
    m = jnp.max(x, axis=-1, keepdims=True)
    e = jnp.exp(x - m)
    p = e * pl.reciprocal(jnp.sum(e, axis=-1, keepdims=True), approx=False)

    # cumsum along class axis via MXU matmul with the resident triangular matrix
    c = jnp.dot(p, tri_ref[...], preferred_element_type=jnp.float32)
    c = jnp.clip(c, 0.0, 1.0)

    # squared error, masking rows of the (possibly padded) final tile
    d = c - yt_ref[...].astype(jnp.float32)
    dd = d * d
    row_ids = i * tile_b + jax.lax.broadcasted_iota(jnp.int32, dd.shape, 0)
    dd = jnp.where(row_ids < batch, dd, jnp.float32(0.0))

    acc_ref[0] += jnp.sum(dd)

    @pl.when(i == n_steps - 1)
    def _finalize():
        out_ref[0, 0] = acc_ref[0] / jnp.float32(batch * n_class)


def crps_loss(y_pred: jax.Array, y_true: jax.Array, tile_b: int | None = None) -> jax.Array:
    """Pallas implementation of CRPSLoss.forward(y_pred, y_true).

    y_pred, y_true: (batch, n_class) float arrays.  Returns a scalar f32 loss.
    """
    assert y_pred.shape == y_true.shape and y_pred.ndim == 2
    B, C = y_pred.shape

    if tile_b is None:
        # Single tile when it trivially fits; otherwise 1024-row tiles
        # (~1 MiB/tile at 256 padded lanes -> well inside the 32 MiB scoped
        # VMEM default on v5e/v6e/v7x with double buffering).
        tile_b = B if B <= 1024 else 1024
    if tile_b != B:
        assert tile_b % 8 == 0, "batch tile must be a multiple of 8 when tiling"

    grid = (pl.cdiv(B, tile_b),)
    kernel = functools.partial(_crps_loss_kernel, batch=B, n_class=C, tile_b=tile_b)

    out = pl.pallas_call(
        kernel,
        out_shape=jax.ShapeDtypeStruct((1, 1), jnp.float32),
        grid_spec=pltpu.PrefetchScalarGridSpec(
            num_scalar_prefetch=0,
            grid=grid,
            in_specs=[
                pl.BlockSpec((tile_b, C), lambda i: (i, 0)),  # y_pred tile
                pl.BlockSpec((tile_b, C), lambda i: (i, 0)),  # y_true tile
            ],
            out_specs=pl.BlockSpec((1, 1), lambda i: (0, 0), memory_space=pltpu.SMEM),
            scratch_shapes=[
                pltpu.VMEM((C, C), jnp.float32),  # resident cumsum operator
                pltpu.SMEM((1,), jnp.float32),    # running sum of squared errors
            ],
        ),
        compiler_params=pltpu.CompilerParams(
            dimension_semantics=("arbitrary",),  # reduction axis (SMEM accumulator)
        ),
    )(y_pred, y_true)
    return out[0, 0]


def _reference(y_pred, y_true):
    p = jax.nn.softmax(y_pred.astype(jnp.float32), axis=1)
    c = jnp.clip(jnp.cumsum(p, axis=1), 0.0, 1.0)
    return jnp.mean((c - y_true.astype(jnp.float32)) ** 2)


if __name__ == "__main__":
    key = jax.random.PRNGKey(0)
    k1, k2, k3, k4 = jax.random.split(key, 4)

    # Case 1: matches CRPSLoss(n_class=199), single-tile path.
    batch, n_class = 8, 199
    y_pred = jax.random.normal(k1, (batch, n_class), dtype=jnp.float32)
    y_true = jnp.clip(
        jnp.cumsum(jax.random.uniform(k2, (batch, n_class), dtype=jnp.float32) * 0.02, axis=1),
        0.0, 1.0,
    )
    loss = crps_loss(y_pred, y_true)
    jax.block_until_ready(loss)
    ref = _reference(y_pred, y_true)
    assert jnp.allclose(loss, ref, rtol=1e-5, atol=1e-6), (loss, ref)

    # Case 2: multi-tile grid with a ragged final tile (exercises masking path).
    batch2 = 20
    y_pred2 = jax.random.normal(k3, (batch2, n_class), dtype=jnp.float32)
    y_true2 = jnp.clip(
        jnp.cumsum(jax.random.uniform(k4, (batch2, n_class), dtype=jnp.float32) * 0.02, axis=1),
        0.0, 1.0,
    )
    loss2 = crps_loss(y_pred2, y_true2, tile_b=8)  # grid=3, last tile has 4 valid rows
    jax.block_until_ready(loss2)
    ref2 = _reference(y_pred2, y_true2)
    assert jnp.allclose(loss2, ref2, rtol=1e-5, atol=1e-6), (loss2, ref2)

    print("KERNEL_OK")
</pallas_src>

<mosaic_0001>
module attributes {stable_mosaic.version = 11 : i64} {
  func.func @_crps_loss_kernel(%arg0: i32, %arg1: memref<8x199xf32, #tpu.memory_space<vmem>>, %arg2: memref<8x199xf32, #tpu.memory_space<vmem>>, %arg3: memref<1x1xf32, #tpu.memory_space<smem>>, %arg4: memref<199x199xf32, #tpu.memory_space<vmem>>, %arg5: memref<1xf32, #tpu.memory_space<smem>>) attributes {dimension_semantics = [#tpu.dimension_semantics<arbitrary>], iteration_bounds = array<i64: 1>, scalar_prefetch = 0 : i64, scratch_operands = 2 : i64, tpu.core_type = #tpu.core_type<tc>, window_params = [{transform_indices = @transform_0, window_bounds = array<i64: 8, 199>}, {transform_indices = @transform_1, window_bounds = array<i64: 8, 199>}, {transform_indices = @transform_2, window_bounds = array<i64: 1, 1>}]} {
    %c0_i32 = arith.constant 0 : i32
    %0 = arith.cmpi eq, %arg0, %c0_i32 : i32
    %1 = arith.extui %0 : i1 to i32
    %c0_i32_0 = arith.constant 0 : i32
    %2 = arith.cmpi ne, %1, %c0_i32_0 : i32
    scf.if %2 {
      %cst_17 = arith.constant 0.000000e+00 : f32
      %c0_18 = arith.constant 0 : index
      %41 = memref.load %arg5[%c0_18] : memref<1xf32, #tpu.memory_space<smem>>
      memref.store %cst_17, %arg5[%c0_18] : memref<1xf32, #tpu.memory_space<smem>>
      %42 = tpu.iota {dimensions = array<i32: 0>} : vector<199x199xi32>
      %43 = tpu.iota {dimensions = array<i32: 1>} : vector<199x199xi32>
      %44 = arith.cmpi sle, %42, %43 : vector<199x199xi32>
      %cst_19 = arith.constant 1.000000e+00 : f32
      %cst_20 = arith.constant 0.000000e+00 : f32
      %45 = vector.broadcast %cst_19 : f32 to vector<199x199xf32>
      %46 = vector.broadcast %cst_20 : f32 to vector<199x199xf32>
      %47 = arith.select %44, %45, %46 : vector<199x199xi1>, vector<199x199xf32>
      %c0_21 = arith.constant 0 : index
      %c0_22 = arith.constant 0 : index
      %48 = vector.load %arg4[%c0_21, %c0_22] : memref<199x199xf32, #tpu.memory_space<vmem>>, vector<199x199xf32>
      tpu.vector_store %arg4[%c0_21, %c0_22], %47 {strides = array<i32>} : memref<199x199xf32, #tpu.memory_space<vmem>>, vector<199x199xf32>,
    } else {
    }
    %c0 = arith.constant 0 : index
    %c0_1 = arith.constant 0 : index
    %3 = vector.load %arg1[%c0, %c0_1] : memref<8x199xf32, #tpu.memory_space<vmem>>, vector<8x199xf32>
    %cst = arith.constant dense<0xFF800000> : vector<8xf32>
    %4 = vector.multi_reduction <maximumf>, %3, %cst [1] : vector<8x199xf32> to vector<8xf32>
    %5 = vector.shape_cast %4 : vector<8xf32> to vector<8x1xf32>
    %6 = vector.broadcast %5 : vector<8x1xf32> to vector<8x199xf32>
    %7 = arith.subf %3, %6 : vector<8x199xf32>
    %8 = math.exp %7 : vector<8x199xf32>
    %cst_2 = arith.constant dense<0.000000e+00> : vector<8xf32>
    %9 = vector.multi_reduction <add>, %8, %cst_2 [1] : vector<8x199xf32> to vector<8xf32>
    %10 = vector.shape_cast %9 : vector<8xf32> to vector<8x1xf32>
    %11 = tpu.reciprocal %10 : vector<8x1xf32> -> vector<8x1xf32>
    %12 = vector.broadcast %11 : vector<8x1xf32> to vector<8x199xf32>
    %13 = arith.mulf %8, %12 : vector<8x199xf32>
    %c0_3 = arith.constant 0 : index
    %c0_4 = arith.constant 0 : index
    %14 = vector.load %arg4[%c0_3, %c0_4] : memref<199x199xf32, #tpu.memory_space<vmem>>, vector<199x199xf32>
    %cst_5 = arith.constant dense<0.000000e+00> : vector<8x199xf32>
    %15 = tpu.matmul %13, %14, %cst_5 {dimension_numbers = #tpu.dot_dimension_numbers<[1], [0], [0], [1], [0, 0, 1, 1], [], []>} : vector<8x199xf32>, vector<199x199xf32>, vector<8x199xf32> -> vector<8x199xf32>
    %cst_6 = arith.constant 0.000000e+00 : f32
    %cst_7 = arith.constant 1.000000e+00 : f32
    %16 = vector.broadcast %cst_6 : f32 to vector<8x199xf32>
    %17 = arith.maximumf %16, %15 : vector<8x199xf32>
    %18 = vector.broadcast %cst_7 : f32 to vector<8x199xf32>
    %19 = arith.minimumf %18, %17 : vector<8x199xf32>
    %c0_8 = arith.constant 0 : index
    %c0_9 = arith.constant 0 : index
    %20 = vector.load %arg2[%c0_8, %c0_9] : memref<8x199xf32, #tpu.memory_space<vmem>>, vector<8x199xf32>
    %21 = arith.subf %19, %20 : vector<8x199xf32>
    %22 = arith.mulf %21, %21 : vector<8x199xf32>
    %c8_i32 = arith.constant 8 : i32
    %23 = arith.muli %arg0, %c8_i32 : i32
    %24 = tpu.iota {dimensions = array<i32: 0>} : vector<8x199xi32>
    %25 = vector.broadcast %23 : i32 to vector<8x199xi32>
    %26 = arith.addi %25, %24 : vector<8x199xi32>
    %c8_i32_10 = arith.constant 8 : i32
    %27 = vector.broadcast %c8_i32_10 : i32 to vector<8x199xi32>
    %28 = arith.cmpi slt, %26, %27 : vector<8x199xi32>
    %cst_11 = arith.constant 0.000000e+00 : f32
    %29 = vector.broadcast %cst_11 : f32 to vector<8x199xf32>
    %30 = arith.select %28, %22, %29 : vector<8x199xi1>, vector<8x199xf32>
    %c0_12 = arith.constant 0 : index
    %31 = memref.load %arg5[%c0_12] : memref<1xf32, #tpu.memory_space<smem>>
    %32 = vector.shape_cast %30 : vector<8x199xf32> to vector<1x8x199xf32>
    %cst_13 = arith.constant dense<0.000000e+00> : vector<1xf32>
    %33 = vector.multi_reduction <add>, %32, %cst_13 [1, 2] : vector<1x8x199xf32> to vector<1xf32>
    %34 = vector.shape_cast %33 : vector<1xf32> to vector<1x1x1xf32>
    %35 = vector.extract %34[0, 0, 0] : f32 from vector<1x1x1xf32>
    %36 = arith.addf %31, %35 : f32
    %c0_14 = arith.constant 0 : index
    %37 = memref.load %arg5[%c0_14] : memref<1xf32, #tpu.memory_space<smem>>
    memref.store %36, %arg5[%c0_14] : memref<1xf32, #tpu.memory_space<smem>>
    %c0_i32_15 = arith.constant 0 : i32
    %38 = arith.cmpi eq, %arg0, %c0_i32_15 : i32
    %39 = arith.extui %38 : i1 to i32
    %c0_i32_16 = arith.constant 0 : i32
    %40 = arith.cmpi ne, %39, %c0_i32_16 : i32
    scf.if %40 {
      %c0_17 = arith.constant 0 : index
      %41 = memref.load %arg5[%c0_17] : memref<1xf32, #tpu.memory_space<smem>>
      %cst_18 = arith.constant 1.592000e+03 : f32
      %42 = arith.divf %41, %cst_18 : f32
      %c0_19 = arith.constant 0 : index
      %c0_20 = arith.constant 0 : index
      %43 = memref.load %arg3[%c0_19, %c0_20] : memref<1x1xf32, #tpu.memory_space<smem>>
      memref.store %42, %arg3[%c0_19, %c0_20] : memref<1x1xf32, #tpu.memory_space<smem>>
    } else {
    }
    return
  }
  func.func @transform_0(%arg0: i32) -> (i32, i32) {
    %c0_i32 = arith.constant 0 : i32
    %c0_i32_0 = arith.constant 0 : i32
    return %arg0, %c0_i32 : i32, i32
  }
  func.func @transform_1(%arg0: i32) -> (i32, i32) {
    %c0_i32 = arith.constant 0 : i32
    %c0_i32_0 = arith.constant 0 : i32
    return %arg0, %c0_i32 : i32, i32
  }
  func.func @transform_2(%arg0: i32) -> (i32, i32) {
    %c0_i32 = arith.constant 0 : i32
    %c0_i32_0 = arith.constant 0 : i32
    %c0_i32_1 = arith.constant 0 : i32
    return %c0_i32, %c0_i32_0 : i32, i32
  }
}

</mosaic_0001>

<llo_original>
// kernel: tpu_custom_call.1
$region0: #{tpu_custom_call.1}
  #allocation0 [shape = 'u32[]', space=smem, size = 0x4, offset = 0x4, fixed_abs, tag = 'smem constant byte address 0x4 - core index']
  #allocation1 [shape = 'u32[144,128]{1,0:T(1,128)}', space=vmem, size = 0x12000, scoped, tag = 'internal scratch']
  #allocation2 [shape = 'f32[199,199]{1,0:T(8,128)}', space=vmem, size = 0x32000, scoped, tag = 'scratch operand']
  #allocation3 [shape = 'f32[1]{0:T(128)}', space=smem, size = 0x200, scoped, tag = 'scratch operand']
  %s0 = inlined_call_operand.hbm [shape: f32[8,199], index: 0, kind: input, shape index: {}]
  %s1 = inlined_call_operand.hbm [shape: f32[8,199], index: 1, kind: input, shape index: {}]
  %s2 = inlined_call_operand.hbm [shape: f32[1,1], index: 2, kind: output, shape index: {}]
  %s3 = sld [smem:[#allocation0]]
  $region34: #{tpu_custom_call.1} parent=0
    _
  %s5 = ssub.s32 1, %s3
  %s6 = scalar_select 0, %s5, %s3
  $region1: #{tpu_custom_call.1} parent=0
    #allocation4 [shape = 'u8[8192]{0}', space=vmem, size = 0x2000, scoped, tag = 'input window, operand 0, single buffered']
    #allocation5 [shape = 's32[1]{0}', space=sflag, size = 0x4, scoped, tag = 'scoped memory for tpu_custom_call.1']
    #allocation6 [shape = 's32[1]{0}', space=sflag, size = 0x4, scoped, tag = 'scoped memory for tpu_custom_call.1']
    #allocation7 [shape = 'u8[8192]{0}', space=vmem, size = 0x2000, scoped, tag = 'input window, operand 1, single buffered']
    #allocation8 [shape = 's32[1]{0}', space=sflag, size = 0x4, scoped, tag = 'scoped memory for tpu_custom_call.1']
    #allocation9 [shape = 'u8[512]{0}', space=smem, size = 0x200, scoped, tag = 'output window, operand 0, single buffered']
    %7 = vsyncpa [#allocation5], 0
    %8 = vsyncpa [#allocation8], 0
    %9 = vsyncpa [#allocation6], 0
    // Predicated region
    $region2: #{tpu_custom_call.1} parent=1 // pred_check
      _
    $region3: #{tpu_custom_call.1} parent=1 // pred_check_branch
      %11 = sbr.rel (0) target = $region5
    $region4: #{tpu_custom_call.1} parent=1 // pred_region
      %s13 = ssub.s32 256, 256
      %14 = vsyncadd [#allocation5], %s13
      %s16 = sshll.u32 [#allocation4], 4
      %s17 = int_to_ptr.vmem [resolvable:$true] %s16
      %19 = dma.hbm_to_vmem [thread:$0]  %s0, 256, %s17, [#allocation5]
    $region5: #{tpu_custom_call.1} parent=1 // pred_fallthru
      _
    // Predicated region
    $region6: #{tpu_custom_call.1} parent=1 // pred_check
      _
    $region7: #{tpu_custom_call.1} parent=1 // pred_check_branch
      %21 = sbr.rel (0) target = $region9
    $region8: #{tpu_custom_call.1} parent=1 // pred_region
      %s23 = ssub.s32 256, 256
      %24 = vsyncadd [#allocation8], %s23
      %s26 = sshll.u32 [#allocation7], 4
      %s27 = int_to_ptr.vmem [resolvable:$true] %s26
      %29 = dma.hbm_to_vmem [thread:$0]  %s1, 256, %s27, [#allocation8]
    $region9: #{tpu_custom_call.1} parent=1 // pred_fallthru
      _
    // Predicated region
    $region10: #{tpu_custom_call.1} parent=1 // pred_check
      _
    $region11: #{tpu_custom_call.1} parent=1 // pred_check_branch
      %31 = sbr.rel (0) target = $region13
    $region12: #{tpu_custom_call.1} parent=1 // pred_region
      %32 = dma.done [#allocation5], 256
    $region13: #{tpu_custom_call.1} parent=1 // pred_fallthru
      _
    // Predicated region
    $region14: #{tpu_custom_call.1} parent=1 // pred_check
      _
    $region15: #{tpu_custom_call.1} parent=1 // pred_check_branch
      %34 = sbr.rel (0) target = $region17
    $region16: #{tpu_custom_call.1} parent=1 // pred_region
      %35 = dma.done [#allocation8], 256
    $region17: #{tpu_custom_call.1} parent=1 // pred_fallthru
      _
    %p36 = scmp.eq.s32.totalorder 0, 0
    // Predicated region
    $region18: #{tpu_custom_call.1} parent=1 // pred_check
      %p37 = pneg %p36
    $region19: #{tpu_custom_call.1} parent=1 // pred_check_branch
      %39 = sbr.rel (%p37) target = $region21
    $region20: #{tpu_custom_call.1} parent=1 // pred_region
      %s40 = scalar_lea.smem [#allocation3], 0
      %41 = sst [smem:[%s40]] 0.0
      %v42 = vlaneseq
      %v43 = vshrl.u32 %v42, 7
      %v44 = vadd.s32 %v43, 8
      %v45 = vadd.s32 %v43, 16
      %v46 = vadd.s32 %v43, 24
      %v47 = vadd.s32 %v43, 32
      %v48 = vadd.s32 %v43, 40
      %v49 = vadd.s32 %v43, 48
      %v50 = vadd.s32 %v43, 56
      %v51 = vadd.s32 %v43, 64
      %v52 = vadd.s32 %v43, 72
      %v53 = vadd.s32 %v43, 80
      %v54 = vadd.s32 %v43, 88
      %v55 = vadd.s32 %v43, 96
      %v56 = vadd.s32 %v43, 104
      %v57 = vadd.s32 %v43, 112
      %v58 = vadd.s32 %v43, 120
      %v59 = vadd.s32 %v43, 128
      %v60 = vadd.s32 %v43, 136
      %v61 = vadd.s32 %v43, 144
      %v62 = vadd.s32 %v43, 152
      %v63 = vadd.s32 %v43, 160
      %v64 = vadd.s32 %v43, 168
      %v65 = vadd.s32 %v43, 176
      %v66 = vadd.s32 %v43, 184
      %v67 = vadd.s32 %v43, 192
      %v68 = vlaneseq
      %v69 = vand.u32 %v68, 127
      %v70 = vadd.s32 %v69, 128
      %vm71 = vcmp.le.s32.totalorder %v43, %v69
      %vm72 = vcmp.le.s32.totalorder %v43, %v70
      %vm73 = vcmp.le.s32.totalorder %v44, %v69
      %vm74 = vcmp.le.s32.totalorder %v44, %v70
      %vm75 = vcmp.le.s32.totalorder %v45, %v69
      %vm76 = vcmp.le.s32.totalorder %v45, %v70
      %vm77 = vcmp.le.s32.totalorder %v46, %v69
      %vm78 = vcmp.le.s32.totalorder %v46, %v70
      %vm79 = vcmp.le.s32.totalorder %v47, %v69
      %vm80 = vcmp.le.s32.totalorder %v47, %v70
      %vm81 = vcmp.le.s32.totalorder %v48, %v69
      %vm82 = vcmp.le.s32.totalorder %v48, %v70
      %vm83 = vcmp.le.s32.totalorder %v49, %v69
      %vm84 = vcmp.le.s32.totalorder %v49, %v70
      %vm85 = vcmp.le.s32.totalorder %v50, %v69
      %vm86 = vcmp.le.s32.totalorder %v50, %v70
      %vm87 = vcmp.le.s32.totalorder %v51, %v69
      %vm88 = vcmp.le.s32.totalorder %v51, %v70
      %vm89 = vcmp.le.s32.totalorder %v52, %v69
      %vm90 = vcmp.le.s32.totalorder %v52, %v70
      %vm91 = vcmp.le.s32.totalorder %v53, %v69
      %vm92 = vcmp.le.s32.totalorder %v53, %v70
      %vm93 = vcmp.le.s32.totalorder %v54, %v69
      %vm94 = vcmp.le.s32.totalorder %v54, %v70
      %vm95 = vcmp.le.s32.totalorder %v55, %v69
      %vm96 = vcmp.le.s32.totalorder %v55, %v70
      %vm97 = vcmp.le.s32.totalorder %v56, %v69
      %vm98 = vcmp.le.s32.totalorder %v56, %v70
      %vm99 = vcmp.le.s32.totalorder %v57, %v69
      %vm100 = vcmp.le.s32.totalorder %v57, %v70
      %vm101 = vcmp.le.s32.totalorder %v58, %v69
      %vm102 = vcmp.le.s32.totalorder %v58, %v70
      %vm103 = vcmp.le.s32.totalorder %v59, %v69
      %vm104 = vcmp.le.s32.totalorder %v59, %v70
      %vm105 = vcmp.le.s32.totalorder %v60, %v69
      %vm106 = vcmp.le.s32.totalorder %v60, %v70
      %vm107 = vcmp.le.s32.totalorder %v61, %v69
      %vm108 = vcmp.le.s32.totalorder %v61, %v70
      %vm109 = vcmp.le.s32.totalorder %v62, %v69
      %vm110 = vcmp.le.s32.totalorder %v62, %v70
      %vm111 = vcmp.le.s32.totalorder %v63, %v69
      %vm112 = vcmp.le.s32.totalorder %v63, %v70
      %vm113 = vcmp.le.s32.totalorder %v64, %v69
      %vm114 = vcmp.le.s32.totalorder %v64, %v70
      %vm115 = vcmp.le.s32.totalorder %v65, %v69
      %vm116 = vcmp.le.s32.totalorder %v65, %v70
      %vm117 = vcmp.le.s32.totalorder %v66, %v69
      %vm118 = vcmp.le.s32.totalorder %v66, %v70
      %vm119 = vcmp.le.s32.totalorder %v67, %v69
      %vm120 = vcmp.le.s32.totalorder %v67, %v70
      %v121 = vsel %vm71, 1.0, 0.0
      %v122 = vsel %vm72, 1.0, 0.0
      %v123 = vsel %vm73, 1.0, 0.0
      %v124 = vsel %vm74, 1.0, 0.0
      %v125 = vsel %vm75, 1.0, 0.0
      %v126 = vsel %vm76, 1.0, 0.0
      %v127 = vsel %vm77, 1.0, 0.0
      %v128 = vsel %vm78, 1.0, 0.0
      %v129 = vsel %vm79, 1.0, 0.0
      %v130 = vsel %vm80, 1.0, 0.0
      %v131 = vsel %vm81, 1.0, 0.0
      %v132 = vsel %vm82, 1.0, 0.0
      %v133 = vsel %vm83, 1.0, 0.0
      %v134 = vsel %vm84, 1.0, 0.0
      %v135 = vsel %vm85, 1.0, 0.0
      %v136 = vsel %vm86, 1.0, 0.0
      %v137 = vsel %vm87, 1.0, 0.0
      %v138 = vsel %vm88, 1.0, 0.0
      %v139 = vsel %vm89, 1.0, 0.0
      %v140 = vsel %vm90, 1.0, 0.0
      %v141 = vsel %vm91, 1.0, 0.0
      %v142 = vsel %vm92, 1.0, 0.0
      %v143 = vsel %vm93, 1.0, 0.0
      %v144 = vsel %vm94, 1.0, 0.0
      %v145 = vsel %vm95, 1.0, 0.0
      %v146 = vsel %vm96, 1.0, 0.0
      %v147 = vsel %vm97, 1.0, 0.0
      %v148 = vsel %vm98, 1.0, 0.0
      %v149 = vsel %vm99, 1.0, 0.0
      %v150 = vsel %vm100, 1.0, 0.0
      %v151 = vsel %vm101, 1.0, 0.0
      %v152 = vsel %vm102, 1.0, 0.0
      %v153 = vsel %vm103, 1.0, 0.0
      %v154 = vsel %vm104, 1.0, 0.0
      %v155 = vsel %vm105, 1.0, 0.0
      %v156 = vsel %vm106, 1.0, 0.0
      %v157 = vsel %vm107, 1.0, 0.0
      %v158 = vsel %vm108, 1.0, 0.0
      %v159 = vsel %vm109, 1.0, 0.0
      %v160 = vsel %vm110, 1.0, 0.0
      %v161 = vsel %vm111, 1.0, 0.0
      %v162 = vsel %vm112, 1.0, 0.0
      %v163 = vsel %vm113, 1.0, 0.0
      %v164 = vsel %vm114, 1.0, 0.0
      %v165 = vsel %vm115, 1.0, 0.0
      %v166 = vsel %vm116, 1.0, 0.0
      %v167 = vsel %vm117, 1.0, 0.0
      %v168 = vsel %vm118, 1.0, 0.0
      %v169 = vsel %vm119, 1.0, 0.0
      %v170 = vsel %vm120, 1.0, 0.0
      %171 = vst [vmem:[#allocation2] sm:$0xff] %v121
      %vm172 = vcmask 580608
      %173 = vst.msk [vmem:[#allocation2 + $0x8] sm:$0xff] %vm172, %v122
      %174 = vst [vmem:[#allocation2 + $0x10] sm:$0xff] %v123
      %175 = vst.msk [vmem:[#allocation2 + $0x18] sm:$0xff] %vm172, %v124
      %176 = vst [vmem:[#allocation2 + $0x20] sm:$0xff] %v125
      %177 = vst.msk [vmem:[#allocation2 + $0x28] sm:$0xff] %vm172, %v126
      %178 = vst [vmem:[#allocation2 + $0x30] sm:$0xff] %v127
      %179 = vst.msk [vmem:[#allocation2 + $0x38] sm:$0xff] %vm172, %v128
      %180 = vst [vmem:[#allocation2 + $0x40] sm:$0xff] %v129
      %181 = vst.msk [vmem:[#allocation2 + $0x48] sm:$0xff] %vm172, %v130
      %182 = vst [vmem:[#allocation2 + $0x50] sm:$0xff] %v131
      %183 = vst.msk [vmem:[#allocation2 + $0x58] sm:$0xff] %vm172, %v132
      %184 = vst [vmem:[#allocation2 + $0x60] sm:$0xff] %v133
      %185 = vst.msk [vmem:[#allocation2 + $0x68] sm:$0xff] %vm172, %v134
      %186 = vst [vmem:[#allocation2 + $0x70] sm:$0xff] %v135
      %187 = vst.msk [vmem:[#allocation2 + $0x78] sm:$0xff] %vm172, %v136
      %188 = vst [vmem:[#allocation2 + $0x80] sm:$0xff] %v137
      %189 = vst.msk [vmem:[#allocation2 + $0x88] sm:$0xff] %vm172, %v138
      %190 = vst [vmem:[#allocation2 + $0x90] sm:$0xff] %v139
      %191 = vst.msk [vmem:[#allocation2 + $0x98] sm:$0xff] %vm172, %v140
      %192 = vst [vmem:[#allocation2 + $0xa0] sm:$0xff] %v141
      %193 = vst.msk [vmem:[#allocation2 + $0xa8] sm:$0xff] %vm172, %v142
      %194 = vst [vmem:[#allocation2 + $0xb0] sm:$0xff] %v143
      %195 = vst.msk [vmem:[#allocation2 + $0xb8] sm:$0xff] %vm172, %v144
      %196 = vst [vmem:[#allocation2 + $0xc0] sm:$0xff] %v145
      %197 = vst.msk [vmem:[#allocation2 + $0xc8] sm:$0xff] %vm172, %v146
      %198 = vst [vmem:[#allocation2 + $0xd0] sm:$0xff] %v147
      %199 = vst.msk [vmem:[#allocation2 + $0xd8] sm:$0xff] %vm172, %v148
      %200 = vst [vmem:[#allocation2 + $0xe0] sm:$0xff] %v149
      %201 = vst.msk [vmem:[#allocation2 + $0xe8] sm:$0xff] %vm172, %v150
      %202 = vst [vmem:[#allocation2 + $0xf0] sm:$0xff] %v151
      %203 = vst.msk [vmem:[#allocation2 + $0xf8] sm:$0xff] %vm172, %v152
      %204 = vst [vmem:[#allocation2 + $0x100] sm:$0xff] %v153
      %205 = vst.msk [vmem:[#allocation2 + $0x108] sm:$0xff] %vm172, %v154
      %206 = vst [vmem:[#allocation2 + $0x110] sm:$0xff] %v155
      %207 = vst.msk [vmem:[#allocation2 + $0x118] sm:$0xff] %vm172, %v156
      %208 = vst [vmem:[#allocation2 + $0x120] sm:$0xff] %v157
      %209 = vst.msk [vmem:[#allocation2 + $0x128] sm:$0xff] %vm172, %v158
      %210 = vst [vmem:[#allocation2 + $0x130] sm:$0xff] %v159
      %211 = vst.msk [vmem:[#allocation2 + $0x138] sm:$0xff] %vm172, %v160
      %212 = vst [vmem:[#allocation2 + $0x140] sm:$0xff] %v161
      %213 = vst.msk [vmem:[#allocation2 + $0x148] sm:$0xff] %vm172, %v162
      %214 = vst [vmem:[#allocation2 + $0x150] sm:$0xff] %v163
      %215 = vst.msk [vmem:[#allocation2 + $0x158] sm:$0xff] %vm172, %v164
      %216 = vst [vmem:[#allocation2 + $0x160] sm:$0xff] %v165
      %217 = vst.msk [vmem:[#allocation2 + $0x168] sm:$0xff] %vm172, %v166
      %218 = vst [vmem:[#allocation2 + $0x170] sm:$0xff] %v167
      %219 = vst.msk [vmem:[#allocation2 + $0x178] sm:$0xff] %vm172, %v168
      %220 = vst [vmem:[#allocation2 + $0x180] sm:$0x7f] %v169
      %vm221 = vcmask 579584
      %222 = vst.msk [vmem:[#allocation2 + $0x188] sm:$0x7f] %vm221, %v170
    $region21: #{tpu_custom_call.1} parent=1 // pred_fallthru
      _
    %v223 = vld [vmem:[#allocation4] sm:$0xff]
    %v224 = vld [vmem:[#allocation4 + $0x8] sm:$0xff]
    %vm225 = vcmask 580608
    %v226 = vsel %vm225, %v224, -inf
    %v227 = vmax.f32 %v223, %v226
    %228 = vmax.xlane.f32.xlu0 %v227
    %v229 = vpop.xlane.xlu0 %228
    %v230 = vsub.f32 %v223, %v229
    %v231 = vsub.f32 %v224, %v229
    %v232 = vmul.f32 %v230, 1.442695
    %v233 = vpow.pop %v232
    %v234 = vmul.f32 %v231, 1.442695
    %v235 = vpow.pop %v234
    %v236 = vsel %vm225, %v235, 0.0
    %v237 = vadd.f32 %v233, %v236
    %238 = vadd.xlane.f32.xlu0 %v237
    %v239 = vpop.xlane.xlu0 %238
    %v240 = vrcp.pop %v239
    %v241 = vmul.f32 %v233, %v240
    %v242 = vmul.f32 %v235, %v240
    %v243 = vld [vmem:[#allocation2] sm:$0xff]
    %v244 = vld [vmem:[#allocation2 + $0x8] sm:$0xff]
    %v245 = vld [vmem:[#allocation2 + $0x10] sm:$0xff]
    %v246 = vld [vmem:[#allocation2 + $0x18] sm:$0xff]
    %v247 = vld [vmem:[#allocation2 + $0x20] sm:$0xff]
    %v248 = vld [vmem:[#allocation2 + $0x28] sm:$0xff]
    %v249 = vld [vmem:[#allocation2 + $0x30] sm:$0xff]
    %v250 = vld [vmem:[#allocation2 + $0x38] sm:$0xff]
    %v251 = vld [vmem:[#allocation2 + $0x40] sm:$0xff]
    %v252 = vld [vmem:[#allocation2 + $0x48] sm:$0xff]
    %v253 = vld [vmem:[#allocation2 + $0x50] sm:$0xff]
    %v254 = vld [vmem:[#allocation2 + $0x58] sm:$0xff]
    %v255 = vld [vmem:[#allocation2 + $0x60] sm:$0xff]
    %v256 = vld [vmem:[#allocation2 + $0x68] sm:$0xff]
    %v257 = vld [vmem:[#allocation2 + $0x70] sm:$0xff]
    %v258 = vld [vmem:[#allocation2 + $0x78] sm:$0xff]
    %v259 = vld [vmem:[#allocation2 + $0x80] sm:$0xff]
    %v260 = vld [vmem:[#allocation2 + $0x88] sm:$0xff]
    %v261 = vld [vmem:[#allocation2 + $0x90] sm:$0xff]
    %v262 = vld [vmem:[#allocation2 + $0x98] sm:$0xff]
    %v263 = vld [vmem:[#allocation2 + $0xa0] sm:$0xff]
    %v264 = vld [vmem:[#allocation2 + $0xa8] sm:$0xff]
    %v265 = vld [vmem:[#allocation2 + $0xb0] sm:$0xff]
    %v266 = vld [vmem:[#allocation2 + $0xb8] sm:$0xff]
    %v267 = vld [vmem:[#allocation2 + $0xc0] sm:$0xff]
    %v268 = vld [vmem:[#allocation2 + $0xc8] sm:$0xff]
    %v269 = vld [vmem:[#allocation2 + $0xd0] sm:$0xff]
    %v270 = vld [vmem:[#allocation2 + $0xd8] sm:$0xff]
    %v271 = vld [vmem:[#allocation2 + $0xe0] sm:$0xff]
    %v272 = vld [vmem:[#allocation2 + $0xe8] sm:$0xff]
    %v273 = vld [vmem:[#allocation2 + $0xf0] sm:$0xff]
    %v274 = vld [vmem:[#allocation2 + $0xf8] sm:$0xff]
    %v275 = vld [vmem:[#allocation2 + $0x100] sm:$0xff]
    %v276 = vld [vmem:[#allocation2 + $0x108] sm:$0xff]
    %v277 = vld [vmem:[#allocation2 + $0x110] sm:$0xff]
    %v278 = vld [vmem:[#allocation2 + $0x118] sm:$0xff]
    %v279 = vld [vmem:[#allocation2 + $0x120] sm:$0xff]
    %v280 = vld [vmem:[#allocation2 + $0x128] sm:$0xff]
    %v281 = vld [vmem:[#allocation2 + $0x130] sm:$0xff]
    %v282 = vld [vmem:[#allocation2 + $0x138] sm:$0xff]
    %v283 = vld [vmem:[#allocation2 + $0x140] sm:$0xff]
    %v284 = vld [vmem:[#allocation2 + $0x148] sm:$0xff]
    %v285 = vld [vmem:[#allocation2 + $0x150] sm:$0xff]
    %v286 = vld [vmem:[#allocation2 + $0x158] sm:$0xff]
    %v287 = vld [vmem:[#allocation2 + $0x160] sm:$0xff]
    %v288 = vld [vmem:[#allocation2 + $0x168] sm:$0xff]
    %v289 = vld [vmem:[#allocation2 + $0x170] sm:$0xff]
    %v290 = vld [vmem:[#allocation2 + $0x178] sm:$0xff]
    %v291 = vld [vmem:[#allocation2 + $0x180] sm:$0x7f]
    %v292 = vld [vmem:[#allocation2 + $0x188] sm:$0x7f]
    %v294 = vsel %vm225, %v242, 0
    %vm296 = vcmask 1046528
    %v298 = vsel %vm296, %v291, 0
    %v301 = vsel %vm296, %v292, 0
    %303 = vmatprep.subr.mxu0 %v274
    %304 = vmatpush1.msra.mxu0 %v273
    %305 = vmatprep.subr.mxu0 %v272
    %306 = vmatpush1.msra.mxu0 %v271
    %307 = vmatprep.subr.mxu0 %v270
    %308 = vmatpush1.msra.mxu0 %v269
    %309 = vmatprep.subr.mxu0 %v268
    %310 = vmatpush1.msra.mxu0 %v267
    %311 = vmatprep.subr.mxu0 %v266
    %312 = vmatpush1.msra.mxu0 %v265
    %313 = vmatprep.subr.mxu0 %v264
    %314 = vmatpush1.msra.mxu0 %v263
    %315 = vmatprep.subr.mxu0 %v262
    %316 = vmatpush1.msra.mxu0 %v261
    %317 = vmatprep.subr.mxu0 %v260
    %318 = vmatpush1.msra.mxu0 %v259
    %319 = vmatprep.subr.mxu0 %v258
    %320 = vmatpush1.msra.mxu0 %v257
    %321 = vmatprep.subr.mxu0 %v256
    %322 = vmatpush1.msra.mxu0 %v255
    %323 = vmatprep.subr.mxu0 %v254
    %324 = vmatpush1.msra.mxu0 %v253
    %325 = vmatprep.subr.mxu0 %v252
    %326 = vmatpush1.msra.mxu0 %v251
    %327 = vmatprep.subr.mxu0 %v250
    %328 = vmatpush1.msra.mxu0 %v249
    %329 = vmatprep.subr.mxu0 %v248
    %330 = vmatpush1.msra.mxu0 %v247
    %331 = vmatprep.subr.mxu0 %v246
    %332 = vmatpush1.msra.mxu0 %v245
    %333 = vmatprep.subr.mxu0 %v244
    %334 = vmatpush1.msra.mxu0 %v243
    %335 = vmatprep.subr.mxu0 0.0
    %336 = vmatpush2.msra.mxu0 0.0
    %337 = vmatprep.subr.mxu0 0.0
    %338 = vmatpush2.msra.mxu0 0.0
    %339 = vmatprep.subr.mxu0 0.0
    %340 = vmatpush2.msra.mxu0 0.0
    %341 = vmatprep.subr.mxu0 0.0
    %342 = vmatpush2.msra.mxu0 0.0
    %343 = vmatprep.subr.mxu0 0.0
    %344 = vmatpush2.msra.mxu0 0.0
    %345 = vmatprep.subr.mxu0 0.0
    %346 = vmatpush2.msra.mxu0 0.0
    %347 = vmatprep.subr.mxu0 0.0
    %348 = vmatpush2.msra.mxu0 0.0
    %349 = vmatprep.subr.mxu0 %v301
    %350 = vmatpush2.msra.mxu0 %v298
    %351 = vmatprep.subr.mxu0 %v290
    %352 = vmatpush2.msra.mxu0 %v289
    %353 = vmatprep.subr.mxu0 %v288
    %354 = vmatpush2.msra.mxu0 %v287
    %355 = vmatprep.subr.mxu0 %v286
    %356 = vmatpush2.msra.mxu0 %v285
    %357 = vmatprep.subr.mxu0 %v284
    %358 = vmatpush2.msra.mxu0 %v283
    %359 = vmatprep.subr.mxu0 %v282
    %360 = vmatpush2.msra.mxu0 %v281
    %361 = vmatprep.subr.mxu0 %v280
    %362 = vmatpush2.msra.mxu0 %v279
    %363 = vmatprep.subr.mxu0 %v278
    %364 = vmatpush2.msra.mxu0 %v277
    %365 = vmatprep.subr.mxu0 %v276
    %366 = vmatpush2.msra.mxu0 %v275
    %367 = vmatprep.mubr.f32.mxu0 %v294
    %368 = vmatmul.mubr.f32.gmra.mxu0 %v241
    %v369 = vpop.f32.mrf.mxu0
    %v370 = vadd.f32 0.0, %v369
    %v371 = vpop.f32.mrf.mxu0
    %v372 = vadd.f32 0.0, %v371
    %373 = vdwg.mxu0
    %v374 = vmax.f32 %v370, 0.0
    %v375 = vmax.f32 %v372, 0.0
    %v376 = vmin.f32 %v374, 1.0
    %v377 = vmin.f32 %v375, 1.0
    %v378 = vld [vmem:[#allocation7] sm:$0xff]
    %v379 = vld [vmem:[#allocation7 + $0x8] sm:$0xff]
    %v380 = vsub.f32 %v376, %v378
    %v381 = vsub.f32 %v377, %v379
    %v382 = vmul.f32 %v380, %v380
    %v383 = vmul.f32 %v381, %v381
    %s384 = smul.u32 0, 8
    %v385 = vlaneseq
    %v386 = vshrl.u32 %v385, 7
    %v387 = vstv %s384
    %v388 = vadd.s32 %v387, %v386
    %vm389 = vcmp.lt.s32.totalorder %v388, 8
    %v390 = vsel %vm389, %v382, 0.0
    %v391 = vsel %vm389, %v383, 0.0
    %s392 = sld [smem:[#allocation3]]
    %v393 = vsel %vm225, %v391, 0.0
    %v394 = vadd.f32 %v390, %v393
    %395 = vadd.xlane.f32.xlu0 %v394
    %v396 = vpop.xlane.xlu0 %395
    %v397 = vrot.slane %v396, 4
    %v398 = vadd.f32 %v396, %v397
    %v399 = vrot.slane %v398, 2
    %v400 = vadd.f32 %v398, %v399
    %v401 = vrot.slane %v400, 1
    %v402 = vadd.f32 %v400, %v401
    %s403 = vtos %v402
    %s404 = sadd.f32 %s392, %s403
    %s405 = scalar_lea.smem [#allocation3], 0
    %406 = sst [smem:[%s405]] %s404
    // Predicated region
    $region22: #{tpu_custom_call.1} parent=1 // pred_check
      %p407 = pneg %p36
    $region23: #{tpu_custom_call.1} parent=1 // pred_check_branch
      %409 = sbr.rel (%p407) target = $region25
    $region24: #{tpu_custom_call.1} parent=1 // pred_region
      %s410 = sld [smem:[#allocation3]]
      %v411 = vrcp.pop 1592.0
      %s412 = vtos %v411
      %s413 = smul.f32 %s410, %s412
      %s414 = scalar_lea.smem [#allocation9], 0
      %415 = sst [smem:[%s414]] %s413
    $region25: #{tpu_custom_call.1} parent=1 // pred_fallthru
      _
    // Predicated region
    $region26: #{tpu_custom_call.1} parent=1 // pred_check
      _
    $region27: #{tpu_custom_call.1} parent=1 // pred_check_branch
      %417 = sbr.rel (0) target = $region29
    $region28: #{tpu_custom_call.1} parent=1 // pred_region
      %s419 = ssub.s32 16, 16
      %420 = vsyncadd [#allocation6], %s419
      %423 = dma.smem_to_hbm [#allocation9], 16, %s2, [#allocation6]
    $region29: #{tpu_custom_call.1} parent=1 // pred_fallthru
      _
    // Predicated region
    $region30: #{tpu_custom_call.1} parent=1 // pred_check
      _
    $region31: #{tpu_custom_call.1} parent=1 // pred_check_branch
      %425 = sbr.rel (0) target = $region33
    $region32: #{tpu_custom_call.1} parent=1 // pred_region
      %426 = dma.done [#allocation6], 16
    $region33: #{tpu_custom_call.1} parent=1 // pred_fallthru
      _
    %427 = sfence
    %428 = vsyncpa [#allocation5], 1
    %429 = vsyncpa [#allocation8], 1
    %430 = vsyncpa [#allocation6], 1

</llo_original>
